<compile_context>
chip_gen: v7x
topology: tpu7x:2x2x1
jax: 0.10.0
libtpu: 0.0.40
codegen_flags: <defaults>
</compile_context>

<pallas_src>
import functools

import jax
import jax.numpy as jnp
from jax.experimental import pallas as pl
from jax.experimental.pallas import tpu as pltpu


# Probe whether this jax exposes BlockSpec(pipeline_mode=...) + pl.Buffered so that
# constant-index weight specs can be single-buffered (important under v7x's 64 MiB
# physical VMEM for large H); fall back to default double-buffering otherwise.
try:
    pl.BlockSpec((8, 128), lambda i: (0, 0), pipeline_mode=pl.Buffered(1))
    _SINGLE_BUFFER_WEIGHTS = True
except Exception:  # missing kwarg / missing pl.Buffered / buffer_count=1 rejected
    _SINGLE_BUFFER_WEIGHTS = False


def _mlp_kernel(z_ref,
                w1_ref, b1_ref,
                w2_ref, b2_ref,
                w3_ref, b3_ref,
                w4_ref, b4_ref,
                o_ref):
    # z_ref: (2, block_n), feature-major -> batch on the 128-lane axis, so every
    # activation vreg and the (2, block_n) output store are lane-dense.
    z = z_ref[...]

    # ---- Layer 1: (H,2)@(2,block_n) on the MXU (K=2 pass is essentially free). ----
    h = jnp.dot(w1_ref[...], z.astype(w1_ref.dtype),
                preferred_element_type=jnp.float32)            # (H, block_n)
    h = jnp.maximum(h + b1_ref[...], 0.0)

    # ---- Layers 2 & 3 (H x H): MXU, f32 accumulation. ----
    h = jnp.dot(w2_ref[...], h.astype(w2_ref.dtype),
                preferred_element_type=jnp.float32)
    h = jnp.maximum(h + b2_ref[...], 0.0)
    h = jnp.dot(w3_ref[...], h.astype(w3_ref.dtype),
                preferred_element_type=jnp.float32)
    h = jnp.maximum(h + b3_ref[...], 0.0)

    # ---- Layer 4 (out = 2): lane-dense (2, block_n) result. ----
    x = jnp.dot(w4_ref[...], h.astype(w4_ref.dtype),
                preferred_element_type=jnp.float32) + b4_ref[...]
    # TODO(synk): on v6e/v7x a bf16 epilogue (bias+ReLU in bf16) would halve vreg
    # pressure; kept in f32 here so the same kernel is also correct on v5e's VPU.
    o_ref[...] = x.astype(o_ref.dtype)


def _choose_block_n(n, h, resident_weight_bytes):
    """Pick the batch (lane) tile: as large as a ~44 MiB VMEM budget allows, a
    multiple of 128, but never so large that the grid collapses below ~2 steps
    (v7x shards a 'parallel' grid axis across its 2 TensorCores)."""
    target = 44 * 1024 * 1024                       # safe under v7x 64 MiB physical
    per_col = 16 * h + 64                           # ~4 f32 (H,) temps + I/O per column
    avail = max(target - resident_weight_bytes, 4 * 1024 * 1024)
    bn = min(int(avail // per_col), 8192)
    bn = max((bn // 128) * 128, 512)
    two_step = -(-((n + 1) // 2) // 128) * 128      # ceil(n/2) rounded up to 128
    bn = min(bn, max(two_step, 128))
    return max(bn, 128)


@functools.partial(jax.jit, static_argnames=("block_n", "weights_bf16"))
def generator3_forward(z, params, *, block_n=None, weights_bf16=False):
    """Fused Generator3 forward.

    z: (N, 2) float32 (PyTorch layout).
    params: PyTorch-style Linear params: w{i} of shape (out, in), b{i} of shape (out, 1).
    weights_bf16: bf16 weights for all four matmuls (MXU-native on v5e/v6e/v7x);
      accumulation stays f32. Activations are re-cast to bf16 before each dot, so the
      error is activation-cast error compounding across layers, not just weight cast.
    """
    N, din = z.shape
    assert din == 2
    H = params["w1"].shape[0]
    dout = params["w4"].shape[0]

    w1, w2, w3, w4 = params["w1"], params["w2"], params["w3"], params["w4"]
    if weights_bf16:
        w1, w2, w3, w4 = (w.astype(jnp.bfloat16) for w in (w1, w2, w3, w4))

    weight_arrays = [w1, params["b1"], w2, params["b2"],
                     w3, params["b3"], w4, params["b4"]]
    w_bytes = sum(int(a.size) * a.dtype.itemsize for a in weight_arrays)
    resident_w = w_bytes * (1 if _SINGLE_BUFFER_WEIGHTS else 2)

    if block_n is None:
        block_n = _choose_block_n(N, H, resident_w)
    assert block_n % 128 == 0, "keep the lane (batch) tile a multiple of 128"

    # Feature-major: batch on lanes. Pad batch to a tile multiple (padded columns run
    # through all layers and are dropped -- wasted work only, no numerical effect).
    # TODO(synk): keep activations feature-major (2, N) end-to-end in the caller to
    # drop these layout round-trips entirely; under jit they fuse with neighbors.
    zt = jnp.transpose(z)                           # (2, N)
    n_pad = (-N) % block_n
    if n_pad:
        zt = jnp.pad(zt, ((0, 0), (0, n_pad)))
    Np = N + n_pad

    def _const_spec(arr):
        # Weights/biases: full array resident every grid step (constant index map).
        if _SINGLE_BUFFER_WEIGHTS:
            return pl.BlockSpec(arr.shape, lambda i: (0, 0),
                                pipeline_mode=pl.Buffered(1))
        return pl.BlockSpec(arr.shape, lambda i: (0, 0))

    # VMEM limit from the actual footprint (weights + f32 temps + double-buffered I/O),
    # clamped to [32 MiB, 64 MiB] so it is valid on v7x and roomy on v5e/v6e.
    act_bytes = 4 * H * block_n * 4
    io_bytes = 2 * (din + dout) * block_n * 4 * 2
    vmem_limit = int(min(max((resident_w + act_bytes + io_bytes) * 5 // 4,
                             32 * 1024 * 1024),
                         64 * 1024 * 1024))

    xt = pl.pallas_call(
        _mlp_kernel,
        out_shape=jax.ShapeDtypeStruct((dout, Np), z.dtype),
        grid_spec=pltpu.PrefetchScalarGridSpec(
            num_scalar_prefetch=0,
            grid=(Np // block_n,),
            in_specs=[
                pl.BlockSpec((din, block_n), lambda i: (0, i)),   # z tile, batch on lanes
                _const_spec(w1), _const_spec(params["b1"]),
                _const_spec(w2), _const_spec(params["b2"]),
                _const_spec(w3), _const_spec(params["b3"]),
                _const_spec(w4), _const_spec(params["b4"]),
            ],
            out_specs=pl.BlockSpec((dout, block_n), lambda i: (0, i)),
        ),
        compiler_params=pltpu.CompilerParams(
            dimension_semantics=("parallel",),
            vmem_limit_bytes=vmem_limit,
        ),
    )(zt, w1, params["b1"], w2, params["b2"],
      w3, params["b3"], w4, params["b4"])

    # Back to PyTorch layout (N, 2), dropping padding columns.
    return jnp.transpose(xt[:, :N])


def init_params(key, nhidden):
    """Deterministic init matching nn.Linear default: U(-1/sqrt(fan_in), 1/sqrt(fan_in)).

    Weights stored PyTorch-style (out_features, in_features); biases (out_features, 1).
    """
    dims = [(2, nhidden), (nhidden, nhidden), (nhidden, nhidden), (nhidden, 2)]
    params = {}
    keys = jax.random.split(key, 2 * len(dims))
    for idx, (fan_in, fan_out) in enumerate(dims):
        bound = 1.0 / jnp.sqrt(float(fan_in))
        w = jax.random.uniform(keys[2 * idx], (fan_out, fan_in), jnp.float32, -bound, bound)
        b = jax.random.uniform(keys[2 * idx + 1], (fan_out, 1), jnp.float32, -bound, bound)
        params[f"w{idx + 1}"] = w
        params[f"b{idx + 1}"] = b
    return params


def _reference(z, p):
    # PyTorch semantics: Linear(z) = z @ W.T + b
    h = jnp.maximum(z @ p["w1"].T + p["b1"].T, 0.0)
    h = jnp.maximum(h @ p["w2"].T + p["b2"].T, 0.0)
    h = jnp.maximum(h @ p["w3"].T + p["b3"].T, 0.0)
    return h @ p["w4"].T + p["b4"].T


if __name__ == "__main__":
    key = jax.random.PRNGKey(0)
    k_z, k_p = jax.random.split(key)

    N, nhidden = 1024, 32
    z = jax.random.normal(k_z, (N, 2), jnp.float32)
    params = init_params(k_p, nhidden)

    ref = _reference(z, params)

    # f32 path (auto block_n: 512 here -> 2 grid steps, both v7x TCs busy).
    out = jax.block_until_ready(generator3_forward(z, params))
    assert out.shape == (N, 2)
    assert jnp.allclose(out, ref, atol=1e-4, rtol=1e-4)

    # Ragged batch size (exercises wrapper-side padding + slice-off).
    zr = z[:777]
    out_r = jax.block_until_ready(generator3_forward(zr, params))
    assert jnp.allclose(out_r, _reference(zr, params), atol=1e-4, rtol=1e-4)

    # bf16-weights path (MXU fast path on all generations); tolerance loosened for the
    # activation re-cast error that compounds across layers.
    out_bf16 = jax.block_until_ready(generator3_forward(z, params, weights_bf16=True))
    assert jnp.allclose(out_bf16, ref, atol=5e-2, rtol=5e-2)

    print("KERNEL_OK")
</pallas_src>

<mosaic_0001>
module attributes {stable_mosaic.version = 11 : i64} {
  func.func @_mlp_kernel(%arg0: i32, %arg1: memref<2x512xf32, #tpu.memory_space<vmem>>, %arg2: memref<32x2xf32, #tpu.memory_space<vmem>>, %arg3: memref<32x1xf32, #tpu.memory_space<vmem>>, %arg4: memref<32x32xf32, #tpu.memory_space<vmem>>, %arg5: memref<32x1xf32, #tpu.memory_space<vmem>>, %arg6: memref<32x32xf32, #tpu.memory_space<vmem>>, %arg7: memref<32x1xf32, #tpu.memory_space<vmem>>, %arg8: memref<2x32xf32, #tpu.memory_space<vmem>>, %arg9: memref<2x1xf32, #tpu.memory_space<vmem>>, %arg10: memref<2x512xf32, #tpu.memory_space<vmem>>) attributes {dimension_semantics = [#tpu.dimension_semantics<parallel>], iteration_bounds = array<i64: 2>, scalar_prefetch = 0 : i64, scratch_operands = 0 : i64, tpu.core_type = #tpu.core_type<tc>, window_params = [{transform_indices = @transform_0, window_bounds = array<i64: 2, 512>}, {pipeline_mode = #tpu.pipeline_mode<synchronous>, transform_indices = @transform_1, window_bounds = array<i64: 32, 2>}, {pipeline_mode = #tpu.pipeline_mode<synchronous>, transform_indices = @transform_2, window_bounds = array<i64: 32, 1>}, {pipeline_mode = #tpu.pipeline_mode<synchronous>, transform_indices = @transform_3, window_bounds = array<i64: 32, 32>}, {pipeline_mode = #tpu.pipeline_mode<synchronous>, transform_indices = @transform_4, window_bounds = array<i64: 32, 1>}, {pipeline_mode = #tpu.pipeline_mode<synchronous>, transform_indices = @transform_5, window_bounds = array<i64: 32, 32>}, {pipeline_mode = #tpu.pipeline_mode<synchronous>, transform_indices = @transform_6, window_bounds = array<i64: 32, 1>}, {pipeline_mode = #tpu.pipeline_mode<synchronous>, transform_indices = @transform_7, window_bounds = array<i64: 2, 32>}, {pipeline_mode = #tpu.pipeline_mode<synchronous>, transform_indices = @transform_8, window_bounds = array<i64: 2, 1>}, {transform_indices = @transform_9, window_bounds = array<i64: 2, 512>}]} {
    %c0 = arith.constant 0 : index
    %c0_0 = arith.constant 0 : index
    %0 = vector.load %arg1[%c0, %c0_0] : memref<2x512xf32, #tpu.memory_space<vmem>>, vector<2x512xf32>
    %c0_1 = arith.constant 0 : index
    %c0_2 = arith.constant 0 : index
    %1 = vector.load %arg2[%c0_1, %c0_2] : memref<32x2xf32, #tpu.memory_space<vmem>>, vector<32x2xf32>
    %cst = arith.constant dense<0.000000e+00> : vector<32x512xf32>
    %2 = tpu.matmul %1, %0, %cst {dimension_numbers = #tpu.dot_dimension_numbers<[1], [0], [0], [1], [0, 0, 1, 1], [], []>} : vector<32x2xf32>, vector<2x512xf32>, vector<32x512xf32> -> vector<32x512xf32>
    %c0_3 = arith.constant 0 : index
    %c0_4 = arith.constant 0 : index
    %3 = vector.load %arg3[%c0_3, %c0_4] : memref<32x1xf32, #tpu.memory_space<vmem>>, vector<32x1xf32>
    %4 = vector.broadcast %3 : vector<32x1xf32> to vector<32x512xf32>
    %5 = arith.addf %2, %4 : vector<32x512xf32>
    %cst_5 = arith.constant 0.000000e+00 : f32
    %6 = vector.broadcast %cst_5 : f32 to vector<32x512xf32>
    %7 = arith.maximumf %5, %6 : vector<32x512xf32>
    %c0_6 = arith.constant 0 : index
    %c0_7 = arith.constant 0 : index
    %8 = vector.load %arg4[%c0_6, %c0_7] : memref<32x32xf32, #tpu.memory_space<vmem>>, vector<32x32xf32>
    %cst_8 = arith.constant dense<0.000000e+00> : vector<32x512xf32>
    %9 = tpu.matmul %8, %7, %cst_8 {dimension_numbers = #tpu.dot_dimension_numbers<[1], [0], [0], [1], [0, 0, 1, 1], [], []>} : vector<32x32xf32>, vector<32x512xf32>, vector<32x512xf32> -> vector<32x512xf32>
    %c0_9 = arith.constant 0 : index
    %c0_10 = arith.constant 0 : index
    %10 = vector.load %arg5[%c0_9, %c0_10] : memref<32x1xf32, #tpu.memory_space<vmem>>, vector<32x1xf32>
    %11 = vector.broadcast %10 : vector<32x1xf32> to vector<32x512xf32>
    %12 = arith.addf %9, %11 : vector<32x512xf32>
    %cst_11 = arith.constant 0.000000e+00 : f32
    %13 = vector.broadcast %cst_11 : f32 to vector<32x512xf32>
    %14 = arith.maximumf %12, %13 : vector<32x512xf32>
    %c0_12 = arith.constant 0 : index
    %c0_13 = arith.constant 0 : index
    %15 = vector.load %arg6[%c0_12, %c0_13] : memref<32x32xf32, #tpu.memory_space<vmem>>, vector<32x32xf32>
    %cst_14 = arith.constant dense<0.000000e+00> : vector<32x512xf32>
    %16 = tpu.matmul %15, %14, %cst_14 {dimension_numbers = #tpu.dot_dimension_numbers<[1], [0], [0], [1], [0, 0, 1, 1], [], []>} : vector<32x32xf32>, vector<32x512xf32>, vector<32x512xf32> -> vector<32x512xf32>
    %c0_15 = arith.constant 0 : index
    %c0_16 = arith.constant 0 : index
    %17 = vector.load %arg7[%c0_15, %c0_16] : memref<32x1xf32, #tpu.memory_space<vmem>>, vector<32x1xf32>
    %18 = vector.broadcast %17 : vector<32x1xf32> to vector<32x512xf32>
    %19 = arith.addf %16, %18 : vector<32x512xf32>
    %cst_17 = arith.constant 0.000000e+00 : f32
    %20 = vector.broadcast %cst_17 : f32 to vector<32x512xf32>
    %21 = arith.maximumf %19, %20 : vector<32x512xf32>
    %c0_18 = arith.constant 0 : index
    %c0_19 = arith.constant 0 : index
    %22 = vector.load %arg8[%c0_18, %c0_19] : memref<2x32xf32, #tpu.memory_space<vmem>>, vector<2x32xf32>
    %cst_20 = arith.constant dense<0.000000e+00> : vector<2x512xf32>
    %23 = tpu.matmul %22, %21, %cst_20 {dimension_numbers = #tpu.dot_dimension_numbers<[1], [0], [0], [1], [0, 0, 1, 1], [], []>} : vector<2x32xf32>, vector<32x512xf32>, vector<2x512xf32> -> vector<2x512xf32>
    %c0_21 = arith.constant 0 : index
    %c0_22 = arith.constant 0 : index
    %24 = vector.load %arg9[%c0_21, %c0_22] : memref<2x1xf32, #tpu.memory_space<vmem>>, vector<2x1xf32>
    %25 = vector.broadcast %24 : vector<2x1xf32> to vector<2x512xf32>
    %26 = arith.addf %23, %25 : vector<2x512xf32>
    %c0_23 = arith.constant 0 : index
    %c0_24 = arith.constant 0 : index
    %27 = vector.load %arg10[%c0_23, %c0_24] : memref<2x512xf32, #tpu.memory_space<vmem>>, vector<2x512xf32>
    tpu.vector_store %arg10[%c0_23, %c0_24], %26 {strides = array<i32>} : memref<2x512xf32, #tpu.memory_space<vmem>>, vector<2x512xf32>,
    return
  }
  func.func @transform_0(%arg0: i32) -> (i32, i32) {
    %c0_i32 = arith.constant 0 : i32
    %c0_i32_0 = arith.constant 0 : i32
    return %c0_i32, %arg0 : i32, i32
  }
  func.func @transform_1(%arg0: i32) -> (i32, i32) {
    %c0_i32 = arith.constant 0 : i32
    %c0_i32_0 = arith.constant 0 : i32
    %c0_i32_1 = arith.constant 0 : i32
    return %c0_i32, %c0_i32_0 : i32, i32
  }
  func.func @transform_2(%arg0: i32) -> (i32, i32) {
    %c0_i32 = arith.constant 0 : i32
    %c0_i32_0 = arith.constant 0 : i32
    %c0_i32_1 = arith.constant 0 : i32
    return %c0_i32, %c0_i32_0 : i32, i32
  }
  func.func @transform_3(%arg0: i32) -> (i32, i32) {
    %c0_i32 = arith.constant 0 : i32
    %c0_i32_0 = arith.constant 0 : i32
    %c0_i32_1 = arith.constant 0 : i32
    return %c0_i32, %c0_i32_0 : i32, i32
  }
  func.func @transform_4(%arg0: i32) -> (i32, i32) {
    %c0_i32 = arith.constant 0 : i32
    %c0_i32_0 = arith.constant 0 : i32
    %c0_i32_1 = arith.constant 0 : i32
    return %c0_i32, %c0_i32_0 : i32, i32
  }
  func.func @transform_5(%arg0: i32) -> (i32, i32) {
    %c0_i32 = arith.constant 0 : i32
    %c0_i32_0 = arith.constant 0 : i32
    %c0_i32_1 = arith.constant 0 : i32
    return %c0_i32, %c0_i32_0 : i32, i32
  }
  func.func @transform_6(%arg0: i32) -> (i32, i32) {
    %c0_i32 = arith.constant 0 : i32
    %c0_i32_0 = arith.constant 0 : i32
    %c0_i32_1 = arith.constant 0 : i32
    return %c0_i32, %c0_i32_0 : i32, i32
  }
  func.func @transform_7(%arg0: i32) -> (i32, i32) {
    %c0_i32 = arith.constant 0 : i32
    %c0_i32_0 = arith.constant 0 : i32
    %c0_i32_1 = arith.constant 0 : i32
    return %c0_i32, %c0_i32_0 : i32, i32
  }
  func.func @transform_8(%arg0: i32) -> (i32, i32) {
    %c0_i32 = arith.constant 0 : i32
    %c0_i32_0 = arith.constant 0 : i32
    %c0_i32_1 = arith.constant 0 : i32
    return %c0_i32, %c0_i32_0 : i32, i32
  }
  func.func @transform_9(%arg0: i32) -> (i32, i32) {
    %c0_i32 = arith.constant 0 : i32
    %c0_i32_0 = arith.constant 0 : i32
    return %c0_i32, %arg0 : i32, i32
  }
}

</mosaic_0001>

<llo_original>
// kernel: generator3_forward.1
$region0: #{generator3_forward.1}
  #allocation0 [shape = 'u32[]', space=smem, size = 0x4, offset = 0x4, fixed_abs, tag = 'smem constant byte address 0x4 - core index']
  #allocation1 [shape = 'u32[144,128]{1,0:T(1,128)}', space=vmem, size = 0x12000, scoped, tag = 'internal scratch']
  %s0 = inlined_call_operand.vmem [shape: f32[2,1024], index: 0, kind: input, shape index: {}]
  %s1 = inlined_call_operand.vmem [shape: f32[32,2], index: 1, kind: input, shape index: {}]
  %s2 = inlined_call_operand.vmem [shape: f32[32,1], index: 2, kind: input, shape index: {}]
  %s3 = inlined_call_operand.vmem [shape: f32[32,32], index: 3, kind: input, shape index: {}]
  %s4 = inlined_call_operand.vmem [shape: f32[32,1], index: 4, kind: input, shape index: {}]
  %s5 = inlined_call_operand.vmem [shape: f32[32,32], index: 5, kind: input, shape index: {}]
  %s6 = inlined_call_operand.vmem [shape: f32[32,1], index: 6, kind: input, shape index: {}]
  %s7 = inlined_call_operand.vmem [shape: f32[2,32], index: 7, kind: input, shape index: {}]
  %s8 = inlined_call_operand.vmem [shape: f32[2,1], index: 8, kind: input, shape index: {}]
  %s9 = inlined_call_operand.hbm [shape: f32[2,1024], index: 9, kind: output, shape index: {}]
  %s10 = sld [smem:[#allocation0]]
  $region69: #{generator3_forward.1} parent=0
    _
  %s12 = ssub.s32 1, %s10
  %s13 = scalar_select 0, %s12, %s10
  $region1: #{generator3_forward.1} parent=0
    #allocation2 [shape = 'u8[8192]{0}', space=vmem, size = 0x2000, scoped, tag = 'output window, operand 0']
    #allocation3 [shape = 's32[2]{0}', space=sflag, size = 0x8, scoped, tag = 'scoped memory for generator3_forward.1']
    %14 = vsyncpa [#allocation3], 0
    %s15 = scalar_lea.sflag [#allocation3], 1
    %16 = vsyncpa %s15, 0
    loop: start=0, step=1, limit=4
    $region2: #{generator3_forward.1} parent=1 // loop_pre_header
      _
    $region3: #{generator3_forward.1} parent=1 // loop_header
      %s18 = sphi 0, %s22
      %p19 = scmp.ge.s32.totalorder %s18, 4
      %s28 = sphi 0, %s30
      %s31 = sphi 0, %s28
      %s32 = sphi 0, %s31
      %s48 = sphi 0, %s32
      %s52 = sphi 0, %s52
      %s54 = sphi 0, %s52
      %s55 = sphi 0, %s54
      %s69 = sphi 0, %s55
      %s73 = sphi 0, %s73
      %s75 = sphi 0, %s73
      %s76 = sphi 0, %s75
      %s90 = sphi 0, %s76
      %s94 = sphi 0, %s94
      %s96 = sphi 0, %s94
      %s97 = sphi 0, %s96
      %s111 = sphi 0, %s97
      %s115 = sphi 0, %s115
      %s117 = sphi 0, %s115
      %s118 = sphi 0, %s117
      %s132 = sphi 0, %s118
      %s136 = sphi 0, %s136
      %s138 = sphi 0, %s136
      %s139 = sphi 0, %s138
      %s153 = sphi 0, %s139
      %s157 = sphi 0, %s157
      %s159 = sphi 0, %s157
      %s160 = sphi 0, %s159
      %s174 = sphi 0, %s160
      %s178 = sphi 0, %s178
      %s180 = sphi 0, %s178
      %s181 = sphi 0, %s180
      %s195 = sphi 0, %s181
      %s199 = sphi 0, %s199
      %s201 = sphi 0, %s199
      %s202 = sphi 0, %s201
      %s216 = sphi 0, %s202
      %s222 = sphi 0, %s224
      %s225 = sphi 0, %s222
      %s226 = sphi 0, %s225
      %s242 = sphi 0, %s226
    $region4: #{generator3_forward.1} parent=1 // loop_header_branch
      %21 = sbr.rel (%p19) target = $region8
    $region5: #{generator3_forward.1} parent=1 // loop_body
      %s23 = ssub.s32 %s18, 1
      %s24 = ssub.s32 %s18, 2
      %s25 = sadd.s32 %s18, 1
      %s26 = ssub.s32 %s18, %s25
      %p27 = scmp.eq.s32.totalorder %s26, 0
      %s29 = sadd.s32 %s28, 1
      %s30 = scalar_select %p27, %s28, %s29
      %p33 = pneg %p27
      %p34 = scmp.eq.s32.totalorder %s18, 1
      %p35 = por %p33, %p34
      %p36 = scmp.ne.s32.totalorder %s28, %s31
      %p37 = scmp.eq.s32.totalorder %s18, 0
      %p38 = por %p36, %p37
      %p39 = scmp.ne.s32.totalorder %s28, %s31
      %p40 = scmp.eq.s32.totalorder %s23, 1
      %p41 = por %p39, %p40
      %p42 = scmp.ne.s32.totalorder %s31, %s32
      %p43 = scmp.eq.s32.totalorder %s23, 0
      %p44 = por %p42, %p43
      %p45 = scmp.ne.s32.totalorder %s31, %s32
      %p46 = scmp.eq.s32.totalorder %s24, 1
      %p47 = por %p45, %p46
      %p49 = scmp.ne.s32.totalorder %s32, %s48
      %p50 = scmp.eq.s32.totalorder %s24, 0
      %p51 = por %p49, %p50
      %s53 = sadd.s32 %s52, 1
      %p56 = scmp.eq.s32.totalorder %s18, 1
      %p57 = scmp.ne.s32.totalorder %s52, %s54
      %p58 = scmp.eq.s32.totalorder %s18, 0
      %p59 = por %p57, %p58
      %p60 = scmp.ne.s32.totalorder %s52, %s54
      %p61 = scmp.eq.s32.totalorder %s23, 1
      %p62 = por %p60, %p61
      %p63 = scmp.ne.s32.totalorder %s54, %s55
      %p64 = scmp.eq.s32.totalorder %s23, 0
      %p65 = por %p63, %p64
      %p66 = scmp.ne.s32.totalorder %s54, %s55
      %p67 = scmp.eq.s32.totalorder %s24, 1
      %p68 = por %p66, %p67
      %p70 = scmp.ne.s32.totalorder %s55, %s69
      %p71 = scmp.eq.s32.totalorder %s24, 0
      %p72 = por %p70, %p71
      %s74 = sadd.s32 %s73, 1
      %p77 = scmp.eq.s32.totalorder %s18, 1
      %p78 = scmp.ne.s32.totalorder %s73, %s75
      %p79 = scmp.eq.s32.totalorder %s18, 0
      %p80 = por %p78, %p79
      %p81 = scmp.ne.s32.totalorder %s73, %s75
      %p82 = scmp.eq.s32.totalorder %s23, 1
      %p83 = por %p81, %p82
      %p84 = scmp.ne.s32.totalorder %s75, %s76
      %p85 = scmp.eq.s32.totalorder %s23, 0
      %p86 = por %p84, %p85
      %p87 = scmp.ne.s32.totalorder %s75, %s76
      %p88 = scmp.eq.s32.totalorder %s24, 1
      %p89 = por %p87, %p88
      %p91 = scmp.ne.s32.totalorder %s76, %s90
      %p92 = scmp.eq.s32.totalorder %s24, 0
      %p93 = por %p91, %p92
      %s95 = sadd.s32 %s94, 1
      %p98 = scmp.eq.s32.totalorder %s18, 1
      %p99 = scmp.ne.s32.totalorder %s94, %s96
      %p100 = scmp.eq.s32.totalorder %s18, 0
      %p101 = por %p99, %p100
      %p102 = scmp.ne.s32.totalorder %s94, %s96
      %p103 = scmp.eq.s32.totalorder %s23, 1
      %p104 = por %p102, %p103
      %p105 = scmp.ne.s32.totalorder %s96, %s97
      %p106 = scmp.eq.s32.totalorder %s23, 0
      %p107 = por %p105, %p106
      %p108 = scmp.ne.s32.totalorder %s96, %s97
      %p109 = scmp.eq.s32.totalorder %s24, 1
      %p110 = por %p108, %p109
      %p112 = scmp.ne.s32.totalorder %s97, %s111
      %p113 = scmp.eq.s32.totalorder %s24, 0
      %p114 = por %p112, %p113
      %s116 = sadd.s32 %s115, 1
      %p119 = scmp.eq.s32.totalorder %s18, 1
      %p120 = scmp.ne.s32.totalorder %s115, %s117
      %p121 = scmp.eq.s32.totalorder %s18, 0
      %p122 = por %p120, %p121
      %p123 = scmp.ne.s32.totalorder %s115, %s117
      %p124 = scmp.eq.s32.totalorder %s23, 1
      %p125 = por %p123, %p124
      %p126 = scmp.ne.s32.totalorder %s117, %s118
      %p127 = scmp.eq.s32.totalorder %s23, 0
      %p128 = por %p126, %p127
      %p129 = scmp.ne.s32.totalorder %s117, %s118
      %p130 = scmp.eq.s32.totalorder %s24, 1
      %p131 = por %p129, %p130
      %p133 = scmp.ne.s32.totalorder %s118, %s132
      %p134 = scmp.eq.s32.totalorder %s24, 0
      %p135 = por %p133, %p134
      %s137 = sadd.s32 %s136, 1
      %p140 = scmp.eq.s32.totalorder %s18, 1
      %p141 = scmp.ne.s32.totalorder %s136, %s138
      %p142 = scmp.eq.s32.totalorder %s18, 0
      %p143 = por %p141, %p142
      %p144 = scmp.ne.s32.totalorder %s136, %s138
      %p145 = scmp.eq.s32.totalorder %s23, 1
      %p146 = por %p144, %p145
      %p147 = scmp.ne.s32.totalorder %s138, %s139
      %p148 = scmp.eq.s32.totalorder %s23, 0
      %p149 = por %p147, %p148
      %p150 = scmp.ne.s32.totalorder %s138, %s139
      %p151 = scmp.eq.s32.totalorder %s24, 1
      %p152 = por %p150, %p151
      %p154 = scmp.ne.s32.totalorder %s139, %s153
      %p155 = scmp.eq.s32.totalorder %s24, 0
      %p156 = por %p154, %p155
      %s158 = sadd.s32 %s157, 1
      %p161 = scmp.eq.s32.totalorder %s18, 1
      %p162 = scmp.ne.s32.totalorder %s157, %s159
      %p163 = scmp.eq.s32.totalorder %s18, 0
      %p164 = por %p162, %p163
      %p165 = scmp.ne.s32.totalorder %s157, %s159
      %p166 = scmp.eq.s32.totalorder %s23, 1
      %p167 = por %p165, %p166
      %p168 = scmp.ne.s32.totalorder %s159, %s160
      %p169 = scmp.eq.s32.totalorder %s23, 0
      %p170 = por %p168, %p169
      %p171 = scmp.ne.s32.totalorder %s159, %s160
      %p172 = scmp.eq.s32.totalorder %s24, 1
      %p173 = por %p171, %p172
      %p175 = scmp.ne.s32.totalorder %s160, %s174
      %p176 = scmp.eq.s32.totalorder %s24, 0
      %p177 = por %p175, %p176
      %s179 = sadd.s32 %s178, 1
      %p182 = scmp.eq.s32.totalorder %s18, 1
      %p183 = scmp.ne.s32.totalorder %s178, %s180
      %p184 = scmp.eq.s32.totalorder %s18, 0
      %p185 = por %p183, %p184
      %p186 = scmp.ne.s32.totalorder %s178, %s180
      %p187 = scmp.eq.s32.totalorder %s23, 1
      %p188 = por %p186, %p187
      %p189 = scmp.ne.s32.totalorder %s180, %s181
      %p190 = scmp.eq.s32.totalorder %s23, 0
      %p191 = por %p189, %p190
      %p192 = scmp.ne.s32.totalorder %s180, %s181
      %p193 = scmp.eq.s32.totalorder %s24, 1
      %p194 = por %p192, %p193
      %p196 = scmp.ne.s32.totalorder %s181, %s195
      %p197 = scmp.eq.s32.totalorder %s24, 0
      %p198 = por %p196, %p197
      %s200 = sadd.s32 %s199, 1
      %p203 = scmp.eq.s32.totalorder %s18, 1
      %p204 = scmp.ne.s32.totalorder %s199, %s201
      %p205 = scmp.eq.s32.totalorder %s18, 0
      %p206 = por %p204, %p205
      %p207 = scmp.ne.s32.totalorder %s199, %s201
      %p208 = scmp.eq.s32.totalorder %s23, 1
      %p209 = por %p207, %p208
      %p210 = scmp.ne.s32.totalorder %s201, %s202
      %p211 = scmp.eq.s32.totalorder %s23, 0
      %p212 = por %p210, %p211
      %p213 = scmp.ne.s32.totalorder %s201, %s202
      %p214 = scmp.eq.s32.totalorder %s24, 1
      %p215 = por %p213, %p214
      %p217 = scmp.ne.s32.totalorder %s202, %s216
      %p218 = scmp.eq.s32.totalorder %s24, 0
      %p219 = por %p217, %p218
      %s220 = ssub.s32 %s18, %s25
      %p221 = scmp.eq.s32.totalorder %s220, 0
      %s223 = sadd.s32 %s222, 1
      %s224 = scalar_select %p221, %s222, %s223
      %p227 = pneg %p221
      %p228 = scmp.eq.s32.totalorder %s18, 1
      %p229 = por %p227, %p228
      %p230 = scmp.ne.s32.totalorder %s222, %s225
      %p231 = scmp.eq.s32.totalorder %s18, 0
      %p232 = por %p230, %p231
      %p233 = scmp.ne.s32.totalorder %s222, %s225
      %p234 = scmp.eq.s32.totalorder %s23, 1
      %p235 = por %p233, %p234
      %p236 = scmp.ne.s32.totalorder %s225, %s226
      %p237 = scmp.eq.s32.totalorder %s23, 0
      %p238 = por %p236, %p237
      %p239 = scmp.ne.s32.totalorder %s225, %s226
      %p240 = scmp.eq.s32.totalorder %s24, 1
      %p241 = por %p239, %p240
      %p243 = scmp.ne.s32.totalorder %s226, %s242
      %p244 = scmp.eq.s32.totalorder %s24, 0
      %p245 = por %p243, %p244
      %p246 = scmp.le.s32.totalorder 1, %s18
      %p247 = scmp.lt.s32.totalorder %s18, 3
      %p248 = pnand %p246, %p247
      %p249 = pneg %p248
      // Predicated region
      $region9: #{generator3_forward.1} parent=5 // pred_check
        _
      $region10: #{generator3_forward.1} parent=5 // pred_check_branch
        %251 = sbr.rel (%p248) target = $region12
      $region11: #{generator3_forward.1} parent=5 // pred_region
        %s252 = ssub.s32 %s18, 1
        // Predicated region
        $region13: #{generator3_forward.1} parent=11 // pred_check
          %p253 = pneg %p65
        $region14: #{generator3_forward.1} parent=11 // pred_check_branch
          %255 = sbr.rel (%p253) target = $region16
        $region15: #{generator3_forward.1} parent=11 // pred_region
          _
        $region16: #{generator3_forward.1} parent=11 // pred_fallthru
          _
        // Predicated region
        $region17: #{generator3_forward.1} parent=11 // pred_check
          %p256 = pneg %p86
        $region18: #{generator3_forward.1} parent=11 // pred_check_branch
          %258 = sbr.rel (%p256) target = $region20
        $region19: #{generator3_forward.1} parent=11 // pred_region
          _
        $region20: #{generator3_forward.1} parent=11 // pred_fallthru
          _
        // Predicated region
        $region21: #{generator3_forward.1} parent=11 // pred_check
          %p259 = pneg %p107
        $region22: #{generator3_forward.1} parent=11 // pred_check_branch
          %261 = sbr.rel (%p259) target = $region24
        $region23: #{generator3_forward.1} parent=11 // pred_region
          _
        $region24: #{generator3_forward.1} parent=11 // pred_fallthru
          _
        // Predicated region
        $region25: #{generator3_forward.1} parent=11 // pred_check
          %p262 = pneg %p128
        $region26: #{generator3_forward.1} parent=11 // pred_check_branch
          %264 = sbr.rel (%p262) target = $region28
        $region27: #{generator3_forward.1} parent=11 // pred_region
          _
        $region28: #{generator3_forward.1} parent=11 // pred_fallthru
          _
        // Predicated region
        $region29: #{generator3_forward.1} parent=11 // pred_check
          %p265 = pneg %p149
        $region30: #{generator3_forward.1} parent=11 // pred_check_branch
          %267 = sbr.rel (%p265) target = $region32
        $region31: #{generator3_forward.1} parent=11 // pred_region
          _
        $region32: #{generator3_forward.1} parent=11 // pred_fallthru
          _
        // Predicated region
        $region33: #{generator3_forward.1} parent=11 // pred_check
          %p268 = pneg %p170
        $region34: #{generator3_forward.1} parent=11 // pred_check_branch
          %270 = sbr.rel (%p268) target = $region36
        $region35: #{generator3_forward.1} parent=11 // pred_region
          _
        $region36: #{generator3_forward.1} parent=11 // pred_fallthru
          _
        // Predicated region
        $region37: #{generator3_forward.1} parent=11 // pred_check
          %p271 = pneg %p191
        $region38: #{generator3_forward.1} parent=11 // pred_check_branch
          %273 = sbr.rel (%p271) target = $region40
        $region39: #{generator3_forward.1} parent=11 // pred_region
          _
        $region40: #{generator3_forward.1} parent=11 // pred_fallthru
          _
        // Predicated region
        $region41: #{generator3_forward.1} parent=11 // pred_check
          %p274 = pneg %p212
        $region42: #{generator3_forward.1} parent=11 // pred_check_branch
          %276 = sbr.rel (%p274) target = $region44
        $region43: #{generator3_forward.1} parent=11 // pred_region
          _
        $region44: #{generator3_forward.1} parent=11 // pred_fallthru
          _
      $region12: #{generator3_forward.1} parent=5 // pred_fallthru
        _
      %p277 = scmp.lt.s32.totalorder %s18, 2
      // Predicated region
      $region45: #{generator3_forward.1} parent=5 // pred_check
        %p278 = pneg %p277
      $region46: #{generator3_forward.1} parent=5 // pred_check_branch
        %280 = sbr.rel (%p278) target = $region48
      $region47: #{generator3_forward.1} parent=5 // pred_region
        // Predicated region
        $region49: #{generator3_forward.1} parent=47 // pred_check
          %p281 = pneg %p38
        $region50: #{generator3_forward.1} parent=47 // pred_check_branch
          %283 = sbr.rel (%p281) target = $region52
        $region51: #{generator3_forward.1} parent=47 // pred_region
          %s284 = smul.u32 4, %s18
          %p285 = scmp.lt.s32.totalorder %s284, 7
          %s286 = scalar_select %p285, %s284, 7
          %s287 = smul.addr %s286, 2
          %s288 = scalar_lea.vmem %s0, %s287
          %s289 = smul.u32 4, %s18
        $region52: #{generator3_forward.1} parent=47 // pred_fallthru
          _
      $region48: #{generator3_forward.1} parent=5 // pred_fallthru
        _
      %p290 = scmp.le.s32.totalorder 1, %s18
      %p291 = scmp.lt.s32.totalorder %s18, 3
      %p292 = pnand %p290, %p291
      %p293 = pneg %p292
      // Predicated region
      $region53: #{generator3_forward.1} parent=5 // pred_check
        _
      $region54: #{generator3_forward.1} parent=5 // pred_check_branch
        %295 = sbr.rel (%p292) target = $region56
      $region55: #{generator3_forward.1} parent=5 // pred_region
        %s296 = ssub.s32 %s18, 1
        %s297 = smul.u32 4, %s23
        %p298 = scmp.lt.s32.totalorder %s297, 7
        %s299 = scalar_select %p298, %s297, 7
        %s300 = smul.addr %s299, 2
        %s301 = scalar_lea.vmem %s0, %s300
        %p302 = pneg %p44
        %p303 = pneg %p41
        %p304 = pneg %p65
        %p305 = pneg %p62
        %p306 = pneg %p86
        %p307 = pneg %p83
        %p308 = pneg %p107
        %p309 = pneg %p104
        %p310 = pneg %p128
        %p311 = pneg %p125
        %p312 = pneg %p149
        %p313 = pneg %p146
        %p314 = pneg %p170
        %p315 = pneg %p167
        %p316 = pneg %p191
        %p317 = pneg %p188
        %p318 = pneg %p212
        %p319 = pneg %p209
        %p320 = pneg %p238
        %p321 = pneg %p235
        %s322 = sand.u32 %s225, 1
        %s323 = scalar_lea.sflag [#allocation3], %s322
        %s324 = sand.u32 %s225, 1
        %s325 = smul.addr %s324, 8
        %s326 = scalar_lea.vmem [#allocation2], %s325
        %s327 = smul.u32 4, %s23
        %p328 = scmp.lt.s32.totalorder %s327, 7
        %s329 = scalar_select %p328, %s327, 7
        %s330 = smul.addr %s329, 2
        %s331 = scalar_lea.vmem %s0, %s330
        %s332 = smul.u32 4, %s23
        %s333 = smul.u32 4, %s23
        %v334 = vld [vmem:[%s331] sm:$0xff]
        %v335 = vld [vmem:[%s1] sm:$0xff]
        %v336 = vld [vmem:[%s1 + $0x8] sm:$0xff]
        %v337 = vld [vmem:[%s1 + $0x10] sm:$0xff]
        %v338 = vld [vmem:[%s1 + $0x18] sm:$0xff]
        %v339 = vld [vmem:[%s2] sm:$0xff]
        %v340 = vld [vmem:[%s2 + $0x8] sm:$0xff]
        %v341 = vld [vmem:[%s2 + $0x10] sm:$0xff]
        %v342 = vld [vmem:[%s2 + $0x18] sm:$0xff]
        %344 = vset.pattern.permute.xlu0 0
        %345 = vperm.xlu0 %344, %v339
        %v346 = vpop.permute.xlu0 %345
        %349 = vset.pattern.permute.xlu0 0
        %350 = vperm.xlu0 %349, %v340
        %v351 = vpop.permute.xlu0 %350
        %354 = vset.pattern.permute.xlu0 0
        %355 = vperm.xlu0 %354, %v341
        %v356 = vpop.permute.xlu0 %355
        %359 = vset.pattern.permute.xlu0 0
        %360 = vperm.xlu0 %359, %v342
        %v361 = vpop.permute.xlu0 %360
        %v364 = vcombine.high %v334, %v334
        %v366 = vunpack.c.l.s4 1983009808
        %v367 = vunpack.c.0.s8 %v366
        %v368 = vlaneseq
        %v369 = vshrl.u32 %v368, 7
        %v370 = vsub.s32 %v367, %v369
        %v371 = vrot.slane %v334, %v370
        %v373 = vunpack.c.l.s4 1983009808
        %v374 = vunpack.c.0.s8 %v373
        %v375 = vlaneseq
        %v376 = vshrl.u32 %v375, 7
        %v377 = vsub.s32 %v374, %v376
        %v378 = vrot.slane %v364, %v377
        %v379 = vcombine.high %v371, %v371
        %v380 = vcombine.high %v378, %v378
        %vm381 = vcmask 15360
        %v383 = vsel %vm381, %v335, 0
        %v386 = vsel %vm381, %v336, 0
        %v389 = vsel %vm381, %v337, 0
        %v392 = vsel %vm381, %v338, 0
        %vm394 = vcmask 1041408
        %v395 = vsel %vm394, %v371, 0
        %v397 = vsel %vm394, %v379, 0
        %v399 = vsel %vm394, %v378, 0
        %v401 = vsel %vm394, %v380, 0
        %403 = vmatprep.subr.mxu0 %v397
        %404 = vmatpush1.msra.mxu0 %v395
        %405 = vmatprep.subr.mxu0 0.0
        %406 = vmatpush1.msra.mxu0 0.0
        %407 = vmatprep.subr.mxu0 0.0
        %408 = vmatpush1.msra.mxu0 0.0
        %409 = vmatprep.subr.mxu0 0.0
        %410 = vmatpush1.msra.mxu0 0.0
        %411 = vmatprep.subr.mxu0 0.0
        %412 = vmatpush1.msra.mxu0 0.0
        %413 = vmatprep.subr.mxu0 0.0
        %414 = vmatpush1.msra.mxu0 0.0
        %415 = vmatprep.subr.mxu0 0.0
        %416 = vmatpush1.msra.mxu0 0.0
        %417 = vmatprep.subr.mxu0 0.0
        %418 = vmatpush1.msra.mxu0 0.0
        %419 = vmatprep.subr.mxu0 0.0
        %420 = vmatpush1.msra.mxu0 0.0
        %421 = vmatprep.subr.mxu0 0.0
        %422 = vmatpush1.msra.mxu0 0.0
        %423 = vmatprep.subr.mxu0 0.0
        %424 = vmatpush1.msra.mxu0 0.0
        %425 = vmatprep.subr.mxu0 0.0
        %426 = vmatpush1.msra.mxu0 0.0
        %427 = vmatprep.subr.mxu0 0.0
        %428 = vmatpush1.msra.mxu0 0.0
        %429 = vmatprep.subr.mxu0 0.0
        %430 = vmatpush1.msra.mxu0 0.0
        %431 = vmatprep.subr.mxu0 0.0
        %432 = vmatpush1.msra.mxu0 0.0
        %433 = vmatprep.subr.mxu0 0.0
        %434 = vmatpush1.msra.mxu0 0.0
        %435 = vmatprep.subr.mxu0 0.0
        %436 = vmatpush1.msra.mxu0 0.0
        %437 = vmatprep.subr.mxu0 0.0
        %438 = vmatpush1.msra.mxu0 0.0
        %439 = vmatprep.subr.mxu0 0.0
        %440 = vmatpush1.msra.mxu0 0.0
        %441 = vmatprep.subr.mxu0 0.0
        %442 = vmatpush1.msra.mxu0 0.0
        %443 = vmatprep.subr.mxu0 0.0
        %444 = vmatpush1.msra.mxu0 0.0
        %445 = vmatprep.subr.mxu0 0.0
        %446 = vmatpush1.msra.mxu0 0.0
        %447 = vmatprep.subr.mxu0 0.0
        %448 = vmatpush1.msra.mxu0 0.0
        %449 = vmatprep.subr.mxu0 0.0
        %450 = vmatpush1.msra.mxu0 0.0
        %451 = vmatprep.subr.mxu0 0.0
        %452 = vmatpush1.msra.mxu0 0.0
        %453 = vmatprep.subr.mxu0 0.0
        %454 = vmatpush1.msra.mxu0 0.0
        %455 = vmatprep.subr.mxu0 0.0
        %456 = vmatpush1.msra.mxu0 0.0
        %457 = vmatprep.subr.mxu0 0.0
        %458 = vmatpush1.msra.mxu0 0.0
        %459 = vmatprep.subr.mxu0 0.0
        %460 = vmatpush1.msra.mxu0 0.0
        %461 = vmatprep.subr.mxu0 0.0
        %462 = vmatpush1.msra.mxu0 0.0
        %463 = vmatprep.subr.mxu0 0.0
        %464 = vmatpush1.msra.mxu0 0.0
        %465 = vmatprep.subr.mxu0 0.0
        %466 = vmatpush1.msra.mxu0 0.0
        %467 = vmatprep.mubr.f32.mxu0 0.0
        %468 = vmatmul.mubr.f32.gmra.mrb[0].mxu0 %v383
        %v469 = vpop.f32.mrb[0].mxu0
        %v470 = vadd.f32 %v346, %v469
        %v471 = vpop.f32.mrb[0].mxu0
        %v472 = vadd.f32 %v346, %v471
        %473 = vmatprep.mubr.f32.mxu0 0.0
        %474 = vmatmul.mubr.f32.gmra.mrb[0].mxu0 %v386
        %v475 = vpop.f32.mrb[0].mxu0
        %v476 = vadd.f32 %v351, %v475
        %v477 = vpop.f32.mrb[0].mxu0
        %v478 = vadd.f32 %v351, %v477
        %479 = vmatprep.mubr.f32.mxu0 0.0
        %480 = vmatmul.mubr.f32.gmra.mrb[0].mxu0 %v389
        %v481 = vpop.f32.mrb[0].mxu0
        %v482 = vadd.f32 %v356, %v481
        %v483 = vpop.f32.mrb[0].mxu0
        %v484 = vadd.f32 %v356, %v483
        %485 = vmatprep.mubr.f32.mxu0 0.0
        %486 = vmatmul.mubr.f32.gmra.mrb[0].mxu0 %v392
        %v487 = vpop.f32.mrb[0].mxu0
        %v488 = vadd.f32 %v361, %v487
        %v489 = vpop.f32.mrb[0].mxu0
        %v490 = vadd.f32 %v361, %v489
        %491 = vdwg.mxu0
        %492 = vmatprep.subr.mxu0 %v401
        %493 = vmatpush1.msra.mxu0 %v399
        %494 = vmatprep.subr.mxu0 0.0
        %495 = vmatpush1.msra.mxu0 0.0
        %496 = vmatprep.subr.mxu0 0.0
        %497 = vmatpush1.msra.mxu0 0.0
        %498 = vmatprep.subr.mxu0 0.0
        %499 = vmatpush1.msra.mxu0 0.0
        %500 = vmatprep.subr.mxu0 0.0
        %501 = vmatpush1.msra.mxu0 0.0
        %502 = vmatprep.subr.mxu0 0.0
        %503 = vmatpush1.msra.mxu0 0.0
        %504 = vmatprep.subr.mxu0 0.0
        %505 = vmatpush1.msra.mxu0 0.0
        %506 = vmatprep.subr.mxu0 0.0
        %507 = vmatpush1.msra.mxu0 0.0
        %508 = vmatprep.subr.mxu0 0.0
        %509 = vmatpush1.msra.mxu0 0.0
        %510 = vmatprep.subr.mxu0 0.0
        %511 = vmatpush1.msra.mxu0 0.0
        %512 = vmatprep.subr.mxu0 0.0
        %513 = vmatpush1.msra.mxu0 0.0
        %514 = vmatprep.subr.mxu0 0.0
        %515 = vmatpush1.msra.mxu0 0.0
        %516 = vmatprep.subr.mxu0 0.0
        %517 = vmatpush1.msra.mxu0 0.0
        %518 = vmatprep.subr.mxu0 0.0
        %519 = vmatpush1.msra.mxu0 0.0
        %520 = vmatprep.subr.mxu0 0.0
        %521 = vmatpush1.msra.mxu0 0.0
        %522 = vmatprep.subr.mxu0 0.0
        %523 = vmatpush1.msra.mxu0 0.0
        %524 = vmatprep.subr.mxu0 0.0
        %525 = vmatpush1.msra.mxu0 0.0
        %526 = vmatprep.subr.mxu0 0.0
        %527 = vmatpush1.msra.mxu0 0.0
        %528 = vmatprep.subr.mxu0 0.0
        %529 = vmatpush1.msra.mxu0 0.0
        %530 = vmatprep.subr.mxu0 0.0
        %531 = vmatpush1.msra.mxu0 0.0
        %532 = vmatprep.subr.mxu0 0.0
        %533 = vmatpush1.msra.mxu0 0.0
        %534 = vmatprep.subr.mxu0 0.0
        %535 = vmatpush1.msra.mxu0 0.0
        %536 = vmatprep.subr.mxu0 0.0
        %537 = vmatpush1.msra.mxu0 0.0
        %538 = vmatprep.subr.mxu0 0.0
        %539 = vmatpush1.msra.mxu0 0.0
        %540 = vmatprep.subr.mxu0 0.0
        %541 = vmatpush1.msra.mxu0 0.0
        %542 = vmatprep.subr.mxu0 0.0
        %543 = vmatpush1.msra.mxu0 0.0
        %544 = vmatprep.subr.mxu0 0.0
        %545 = vmatpush1.msra.mxu0 0.0
        %546 = vmatprep.subr.mxu0 0.0
        %547 = vmatpush1.msra.mxu0 0.0
        %548 = vmatprep.subr.mxu0 0.0
        %549 = vmatpush1.msra.mxu0 0.0
        %550 = vmatprep.subr.mxu0 0.0
        %551 = vmatpush1.msra.mxu0 0.0
        %552 = vmatprep.subr.mxu0 0.0
        %553 = vmatpush1.msra.mxu0 0.0
        %554 = vmatprep.subr.mxu0 0.0
        %555 = vmatpush1.msra.mxu0 0.0
        %556 = vmatprep.mubr.f32.mxu0 0.0
        %557 = vmatmul.mubr.f32.gmra.mrb[0].mxu0 %v383
        %v558 = vpop.f32.mrb[0].mxu0
        %v559 = vadd.f32 %v346, %v558
        %v560 = vpop.f32.mrb[0].mxu0
        %v561 = vadd.f32 %v346, %v560
        %562 = vmatprep.mubr.f32.mxu0 0.0
        %563 = vmatmul.mubr.f32.gmra.mrb[0].mxu0 %v386
        %v564 = vpop.f32.mrb[0].mxu0
        %v565 = vadd.f32 %v351, %v564
        %v566 = vpop.f32.mrb[0].mxu0
        %v567 = vadd.f32 %v351, %v566
        %568 = vmatprep.mubr.f32.mxu0 0.0
        %569 = vmatmul.mubr.f32.gmra.mrb[0].mxu0 %v389
        %v570 = vpop.f32.mrb[0].mxu0
        %v571 = vadd.f32 %v356, %v570
        %v572 = vpop.f32.mrb[0].mxu0
        %v573 = vadd.f32 %v356, %v572
        %574 = vmatprep.mubr.f32.mxu0 0.0
        %575 = vmatmul.mubr.f32.gmra.mrb[0].mxu0 %v392
        %v576 = vpop.f32.mrb[0].mxu0
        %v577 = vadd.f32 %v361, %v576
        %v578 = vpop.f32.mrb[0].mxu0
        %v579 = vadd.f32 %v361, %v578
        %580 = vdwg.mxu0
        %v581 = vmax.f32 %v470, 0.0
        %v582 = vmax.f32 %v472, 0.0
        %v583 = vmax.f32 %v559, 0.0
        %v584 = vmax.f32 %v561, 0.0
        %v585 = vmax.f32 %v476, 0.0
        %v586 = vmax.f32 %v478, 0.0
        %v587 = vmax.f32 %v565, 0.0
        %v588 = vmax.f32 %v567, 0.0
        %v589 = vmax.f32 %v482, 0.0
        %v590 = vmax.f32 %v484, 0.0
        %v591 = vmax.f32 %v571, 0.0
        %v592 = vmax.f32 %v573, 0.0
        %v593 = vmax.f32 %v488, 0.0
        %v594 = vmax.f32 %v490, 0.0
        %v595 = vmax.f32 %v577, 0.0
        %v596 = vmax.f32 %v579, 0.0
        %v597 = vld [vmem:[%s3] sm:$0xff]
        %v598 = vld [vmem:[%s3 + $0x8] sm:$0xff]
        %v599 = vld [vmem:[%s3 + $0x10] sm:$0xff]
        %v600 = vld [vmem:[%s3 + $0x18] sm:$0xff]
        %v601 = vld [vmem:[%s4] sm:$0xff]
        %v602 = vld [vmem:[%s4 + $0x8] sm:$0xff]
        %v603 = vld [vmem:[%s4 + $0x10] sm:$0xff]
        %v604 = vld [vmem:[%s4 + $0x18] sm:$0xff]
        %606 = vset.pattern.permute.xlu0 0
        %607 = vperm.xlu0 %606, %v601
        %v608 = vpop.permute.xlu0 %607
        %611 = vset.pattern.permute.xlu0 0
        %612 = vperm.xlu0 %611, %v602
        %v613 = vpop.permute.xlu0 %612
        %616 = vset.pattern.permute.xlu0 0
        %617 = vperm.xlu0 %616, %v603
        %v618 = vpop.permute.xlu0 %617
        %621 = vset.pattern.permute.xlu0 0
        %622 = vperm.xlu0 %621, %v604
        %v623 = vpop.permute.xlu0 %622
        %vm625 = vcmask 261120
        %v627 = vsel %vm625, %v597, 0
        %v630 = vsel %vm625, %v598, 0
        %v633 = vsel %vm625, %v599, 0
        %v636 = vsel %vm625, %v600, 0
        %638 = vmatprep.subr.mxu0 %v582
        %639 = vmatpush1.msra.mxu0 %v581
        %640 = vmatprep.subr.mxu0 %v586
        %641 = vmatpush1.msra.mxu0 %v585
        %642 = vmatprep.subr.mxu0 %v590
        %643 = vmatpush1.msra.mxu0 %v589
        %644 = vmatprep.subr.mxu0 %v594
        %645 = vmatpush1.msra.mxu0 %v593
        %646 = vmatprep.subr.mxu0 0.0
        %647 = vmatpush1.msra.mxu0 0.0
        %648 = vmatprep.subr.mxu0 0.0
        %649 = vmatpush1.msra.mxu0 0.0
        %650 = vmatprep.subr.mxu0 0.0
        %651 = vmatpush1.msra.mxu0 0.0
        %652 = vmatprep.subr.mxu0 0.0
        %653 = vmatpush1.msra.mxu0 0.0
        %654 = vmatprep.subr.mxu0 0.0
        %655 = vmatpush1.msra.mxu0 0.0
        %656 = vmatprep.subr.mxu0 0.0
        %657 = vmatpush1.msra.mxu0 0.0
        %658 = vmatprep.subr.mxu0 0.0
        %659 = vmatpush1.msra.mxu0 0.0
        %660 = vmatprep.subr.mxu0 0.0
        %661 = vmatpush1.msra.mxu0 0.0
        %662 = vmatprep.subr.mxu0 0.0
        %663 = vmatpush1.msra.mxu0 0.0
        %664 = vmatprep.subr.mxu0 0.0
        %665 = vmatpush1.msra.mxu0 0.0
        %666 = vmatprep.subr.mxu0 0.0
        %667 = vmatpush1.msra.mxu0 0.0
        %668 = vmatprep.subr.mxu0 0.0
        %669 = vmatpush1.msra.mxu0 0.0
        %670 = vmatprep.subr.mxu0 0.0
        %671 = vmatpush1.msra.mxu0 0.0
        %672 = vmatprep.subr.mxu0 0.0
        %673 = vmatpush1.msra.mxu0 0.0
        %674 = vmatprep.subr.mxu0 0.0
        %675 = vmatpush1.msra.mxu0 0.0
        %676 = vmatprep.subr.mxu0 0.0
        %677 = vmatpush1.msra.mxu0 0.0
        %678 = vmatprep.subr.mxu0 0.0
        %679 = vmatpush1.msra.mxu0 0.0
        %680 = vmatprep.subr.mxu0 0.0
        %681 = vmatpush1.msra.mxu0 0.0
        %682 = vmatprep.subr.mxu0 0.0
        %683 = vmatpush1.msra.mxu0 0.0
        %684 = vmatprep.subr.mxu0 0.0
        %685 = vmatpush1.msra.mxu0 0.0
        %686 = vmatprep.subr.mxu0 0.0
        %687 = vmatpush1.msra.mxu0 0.0
        %688 = vmatprep.subr.mxu0 0.0
        %689 = vmatpush1.msra.mxu0 0.0
        %690 = vmatprep.subr.mxu0 0.0
        %691 = vmatpush1.msra.mxu0 0.0
        %692 = vmatprep.subr.mxu0 0.0
        %693 = vmatpush1.msra.mxu0 0.0
        %694 = vmatprep.subr.mxu0 0.0
        %695 = vmatpush1.msra.mxu0 0.0
        %696 = vmatprep.subr.mxu0 0.0
        %697 = vmatpush1.msra.mxu0 0.0
        %698 = vmatprep.subr.mxu0 0.0
        %699 = vmatpush1.msra.mxu0 0.0
        %700 = vmatprep.subr.mxu0 0.0
        %701 = vmatpush1.msra.mxu0 0.0
        %702 = vmatprep.mubr.f32.mxu0 0.0
        %703 = vmatmul.mubr.f32.gmra.mrb[0].mxu0 %v627
        %v704 = vpop.f32.mrb[0].mxu0
        %v705 = vadd.f32 %v608, %v704
        %v706 = vpop.f32.mrb[0].mxu0
        %v707 = vadd.f32 %v608, %v706
        %708 = vmatprep.mubr.f32.mxu0 0.0
        %709 = vmatmul.mubr.f32.gmra.mrb[0].mxu0 %v630
        %v710 = vpop.f32.mrb[0].mxu0
        %v711 = vadd.f32 %v613, %v710
        %v712 = vpop.f32.mrb[0].mxu0
        %v713 = vadd.f32 %v613, %v712
        %714 = vmatprep.mubr.f32.mxu0 0.0
        %715 = vmatmul.mubr.f32.gmra.mrb[0].mxu0 %v633
        %v716 = vpop.f32.mrb[0].mxu0
        %v717 = vadd.f32 %v618, %v716
        %v718 = vpop.f32.mrb[0].mxu0
        %v719 = vadd.f32 %v618, %v718
        %720 = vmatprep.mubr.f32.mxu0 0.0
        %721 = vmatmul.mubr.f32.gmra.mrb[0].mxu0 %v636
        %v722 = vpop.f32.mrb[0].mxu0
        %v723 = vadd.f32 %v623, %v722
        %v724 = vpop.f32.mrb[0].mxu0
        %v725 = vadd.f32 %v623, %v724
        %726 = vdwg.mxu0
        %727 = vmatprep.subr.mxu0 %v584
        %728 = vmatpush1.msra.mxu0 %v583
        %729 = vmatprep.subr.mxu0 %v588
        %730 = vmatpush1.msra.mxu0 %v587
        %731 = vmatprep.subr.mxu0 %v592
        %732 = vmatpush1.msra.mxu0 %v591
        %733 = vmatprep.subr.mxu0 %v596
        %734 = vmatpush1.msra.mxu0 %v595
        %735 = vmatprep.subr.mxu0 0.0
        %736 = vmatpush1.msra.mxu0 0.0
        %737 = vmatprep.subr.mxu0 0.0
        %738 = vmatpush1.msra.mxu0 0.0
        %739 = vmatprep.subr.mxu0 0.0
        %740 = vmatpush1.msra.mxu0 0.0
        %741 = vmatprep.subr.mxu0 0.0
        %742 = vmatpush1.msra.mxu0 0.0
        %743 = vmatprep.subr.mxu0 0.0
        %744 = vmatpush1.msra.mxu0 0.0
        %745 = vmatprep.subr.mxu0 0.0
        %746 = vmatpush1.msra.mxu0 0.0
        %747 = vmatprep.subr.mxu0 0.0
        %748 = vmatpush1.msra.mxu0 0.0
        %749 = vmatprep.subr.mxu0 0.0
        %750 = vmatpush1.msra.mxu0 0.0
        %751 = vmatprep.subr.mxu0 0.0
        %752 = vmatpush1.msra.mxu0 0.0
        %753 = vmatprep.subr.mxu0 0.0
        %754 = vmatpush1.msra.mxu0 0.0
        %755 = vmatprep.subr.mxu0 0.0
        %756 = vmatpush1.msra.mxu0 0.0
        %757 = vmatprep.subr.mxu0 0.0
        %758 = vmatpush1.msra.mxu0 0.0
        %759 = vmatprep.subr.mxu0 0.0
        %760 = vmatpush1.msra.mxu0 0.0
        %761 = vmatprep.subr.mxu0 0.0
        %762 = vmatpush1.msra.mxu0 0.0
        %763 = vmatprep.subr.mxu0 0.0
        %764 = vmatpush1.msra.mxu0 0.0
        %765 = vmatprep.subr.mxu0 0.0
        %766 = vmatpush1.msra.mxu0 0.0
        %767 = vmatprep.subr.mxu0 0.0
        %768 = vmatpush1.msra.mxu0 0.0
        %769 = vmatprep.subr.mxu0 0.0
        %770 = vmatpush1.msra.mxu0 0.0
        %771 = vmatprep.subr.mxu0 0.0
        %772 = vmatpush1.msra.mxu0 0.0
        %773 = vmatprep.subr.mxu0 0.0
        %774 = vmatpush1.msra.mxu0 0.0
        %775 = vmatprep.subr.mxu0 0.0
        %776 = vmatpush1.msra.mxu0 0.0
        %777 = vmatprep.subr.mxu0 0.0
        %778 = vmatpush1.msra.mxu0 0.0
        %779 = vmatprep.subr.mxu0 0.0
        %780 = vmatpush1.msra.mxu0 0.0
        %781 = vmatprep.subr.mxu0 0.0
        %782 = vmatpush1.msra.mxu0 0.0
        %783 = vmatprep.subr.mxu0 0.0
        %784 = vmatpush1.msra.mxu0 0.0
        %785 = vmatprep.subr.mxu0 0.0
        %786 = vmatpush1.msra.mxu0 0.0
        %787 = vmatprep.subr.mxu0 0.0
        %788 = vmatpush1.msra.mxu0 0.0
        %789 = vmatprep.subr.mxu0 0.0
        %790 = vmatpush1.msra.mxu0 0.0
        %791 = vmatprep.mubr.f32.mxu0 0.0
        %792 = vmatmul.mubr.f32.gmra.mrb[0].mxu0 %v627
        %v793 = vpop.f32.mrb[0].mxu0
        %v794 = vadd.f32 %v608, %v793
        %v795 = vpop.f32.mrb[0].mxu0
        %v796 = vadd.f32 %v608, %v795
        %797 = vmatprep.mubr.f32.mxu0 0.0
        %798 = vmatmul.mubr.f32.gmra.mrb[0].mxu0 %v630
        %v799 = vpop.f32.mrb[0].mxu0
        %v800 = vadd.f32 %v613, %v799
        %v801 = vpop.f32.mrb[0].mxu0
        %v802 = vadd.f32 %v613, %v801
        %803 = vmatprep.mubr.f32.mxu0 0.0
        %804 = vmatmul.mubr.f32.gmra.mrb[0].mxu0 %v633
        %v805 = vpop.f32.mrb[0].mxu0
        %v806 = vadd.f32 %v618, %v805
        %v807 = vpop.f32.mrb[0].mxu0
        %v808 = vadd.f32 %v618, %v807
        %809 = vmatprep.mubr.f32.mxu0 0.0
        %810 = vmatmul.mubr.f32.gmra.mrb[0].mxu0 %v636
        %v811 = vpop.f32.mrb[0].mxu0
        %v812 = vadd.f32 %v623, %v811
        %v813 = vpop.f32.mrb[0].mxu0
        %v814 = vadd.f32 %v623, %v813
        %815 = vdwg.mxu0
        %v816 = vmax.f32 %v705, 0.0
        %v817 = vmax.f32 %v707, 0.0
        %v818 = vmax.f32 %v794, 0.0
        %v819 = vmax.f32 %v796, 0.0
        %v820 = vmax.f32 %v711, 0.0
        %v821 = vmax.f32 %v713, 0.0
        %v822 = vmax.f32 %v800, 0.0
        %v823 = vmax.f32 %v802, 0.0
        %v824 = vmax.f32 %v717, 0.0
        %v825 = vmax.f32 %v719, 0.0
        %v826 = vmax.f32 %v806, 0.0
        %v827 = vmax.f32 %v808, 0.0
        %v828 = vmax.f32 %v723, 0.0
        %v829 = vmax.f32 %v725, 0.0
        %v830 = vmax.f32 %v812, 0.0
        %v831 = vmax.f32 %v814, 0.0
        %v832 = vld [vmem:[%s5] sm:$0xff]
        %v833 = vld [vmem:[%s5 + $0x8] sm:$0xff]
        %v834 = vld [vmem:[%s5 + $0x10] sm:$0xff]
        %v835 = vld [vmem:[%s5 + $0x18] sm:$0xff]
        %v836 = vld [vmem:[%s6] sm:$0xff]
        %v837 = vld [vmem:[%s6 + $0x8] sm:$0xff]
        %v838 = vld [vmem:[%s6 + $0x10] sm:$0xff]
        %v839 = vld [vmem:[%s6 + $0x18] sm:$0xff]
        %841 = vset.pattern.permute.xlu0 0
        %842 = vperm.xlu0 %841, %v836
        %v843 = vpop.permute.xlu0 %842
        %846 = vset.pattern.permute.xlu0 0
        %847 = vperm.xlu0 %846, %v837
        %v848 = vpop.permute.xlu0 %847
        %851 = vset.pattern.permute.xlu0 0
        %852 = vperm.xlu0 %851, %v838
        %v853 = vpop.permute.xlu0 %852
        %856 = vset.pattern.permute.xlu0 0
        %857 = vperm.xlu0 %856, %v839
        %v858 = vpop.permute.xlu0 %857
        %v861 = vsel %vm625, %v832, 0
        %v864 = vsel %vm625, %v833, 0
        %v867 = vsel %vm625, %v834, 0
        %v870 = vsel %vm625, %v835, 0
        %872 = vmatprep.subr.mxu0 %v817
        %873 = vmatpush1.msra.mxu0 %v816
        %874 = vmatprep.subr.mxu0 %v821
        %875 = vmatpush1.msra.mxu0 %v820
        %876 = vmatprep.subr.mxu0 %v825
        %877 = vmatpush1.msra.mxu0 %v824
        %878 = vmatprep.subr.mxu0 %v829
        %879 = vmatpush1.msra.mxu0 %v828
        %880 = vmatprep.subr.mxu0 0.0
        %881 = vmatpush1.msra.mxu0 0.0
        %882 = vmatprep.subr.mxu0 0.0
        %883 = vmatpush1.msra.mxu0 0.0
        %884 = vmatprep.subr.mxu0 0.0
        %885 = vmatpush1.msra.mxu0 0.0
        %886 = vmatprep.subr.mxu0 0.0
        %887 = vmatpush1.msra.mxu0 0.0
        %888 = vmatprep.subr.mxu0 0.0
        %889 = vmatpush1.msra.mxu0 0.0
        %890 = vmatprep.subr.mxu0 0.0
        %891 = vmatpush1.msra.mxu0 0.0
        %892 = vmatprep.subr.mxu0 0.0
        %893 = vmatpush1.msra.mxu0 0.0
        %894 = vmatprep.subr.mxu0 0.0
        %895 = vmatpush1.msra.mxu0 0.0
        %896 = vmatprep.subr.mxu0 0.0
        %897 = vmatpush1.msra.mxu0 0.0
        %898 = vmatprep.subr.mxu0 0.0
        %899 = vmatpush1.msra.mxu0 0.0
        %900 = vmatprep.subr.mxu0 0.0
        %901 = vmatpush1.msra.mxu0 0.0
        %902 = vmatprep.subr.mxu0 0.0
        %903 = vmatpush1.msra.mxu0 0.0
        %904 = vmatprep.subr.mxu0 0.0
        %905 = vmatpush1.msra.mxu0 0.0
        %906 = vmatprep.subr.mxu0 0.0
        %907 = vmatpush1.msra.mxu0 0.0
        %908 = vmatprep.subr.mxu0 0.0
        %909 = vmatpush1.msra.mxu0 0.0
        %910 = vmatprep.subr.mxu0 0.0
        %911 = vmatpush1.msra.mxu0 0.0
        %912 = vmatprep.subr.mxu0 0.0
        %913 = vmatpush1.msra.mxu0 0.0
        %914 = vmatprep.subr.mxu0 0.0
        %915 = vmatpush1.msra.mxu0 0.0
        %916 = vmatprep.subr.mxu0 0.0
        %917 = vmatpush1.msra.mxu0 0.0
        %918 = vmatprep.subr.mxu0 0.0
        %919 = vmatpush1.msra.mxu0 0.0
        %920 = vmatprep.subr.mxu0 0.0
        %921 = vmatpush1.msra.mxu0 0.0
        %922 = vmatprep.subr.mxu0 0.0
        %923 = vmatpush1.msra.mxu0 0.0
        %924 = vmatprep.subr.mxu0 0.0
        %925 = vmatpush1.msra.mxu0 0.0
        %926 = vmatprep.subr.mxu0 0.0
        %927 = vmatpush1.msra.mxu0 0.0
        %928 = vmatprep.subr.mxu0 0.0
        %929 = vmatpush1.msra.mxu0 0.0
        %930 = vmatprep.subr.mxu0 0.0
        %931 = vmatpush1.msra.mxu0 0.0
        %932 = vmatprep.subr.mxu0 0.0
        %933 = vmatpush1.msra.mxu0 0.0
        %934 = vmatprep.subr.mxu0 0.0
        %935 = vmatpush1.msra.mxu0 0.0
        %936 = vmatprep.mubr.f32.mxu0 0.0
        %937 = vmatmul.mubr.f32.gmra.mrb[0].mxu0 %v861
        %v938 = vpop.f32.mrb[0].mxu0
        %v939 = vadd.f32 %v843, %v938
        %v940 = vpop.f32.mrb[0].mxu0
        %v941 = vadd.f32 %v843, %v940
        %942 = vmatprep.mubr.f32.mxu0 0.0
        %943 = vmatmul.mubr.f32.gmra.mrb[0].mxu0 %v864
        %v944 = vpop.f32.mrb[0].mxu0
        %v945 = vadd.f32 %v848, %v944
        %v946 = vpop.f32.mrb[0].mxu0
        %v947 = vadd.f32 %v848, %v946
        %948 = vmatprep.mubr.f32.mxu0 0.0
        %949 = vmatmul.mubr.f32.gmra.mrb[0].mxu0 %v867
        %v950 = vpop.f32.mrb[0].mxu0
        %v951 = vadd.f32 %v853, %v950
        %v952 = vpop.f32.mrb[0].mxu0
        %v953 = vadd.f32 %v853, %v952
        %954 = vmatprep.mubr.f32.mxu0 0.0
        %955 = vmatmul.mubr.f32.gmra.mrb[0].mxu0 %v870
        %v956 = vpop.f32.mrb[0].mxu0
        %v957 = vadd.f32 %v858, %v956
        %v958 = vpop.f32.mrb[0].mxu0
        %v959 = vadd.f32 %v858, %v958
        %960 = vdwg.mxu0
        %961 = vmatprep.subr.mxu0 %v819
        %962 = vmatpush1.msra.mxu0 %v818
        %963 = vmatprep.subr.mxu0 %v823
        %964 = vmatpush1.msra.mxu0 %v822
        %965 = vmatprep.subr.mxu0 %v827
        %966 = vmatpush1.msra.mxu0 %v826
        %967 = vmatprep.subr.mxu0 %v831
        %968 = vmatpush1.msra.mxu0 %v830
        %969 = vmatprep.subr.mxu0 0.0
        %970 = vmatpush1.msra.mxu0 0.0
        %971 = vmatprep.subr.mxu0 0.0
        %972 = vmatpush1.msra.mxu0 0.0
        %973 = vmatprep.subr.mxu0 0.0
        %974 = vmatpush1.msra.mxu0 0.0
        %975 = vmatprep.subr.mxu0 0.0
        %976 = vmatpush1.msra.mxu0 0.0
        %977 = vmatprep.subr.mxu0 0.0
        %978 = vmatpush1.msra.mxu0 0.0
        %979 = vmatprep.subr.mxu0 0.0
        %980 = vmatpush1.msra.mxu0 0.0
        %981 = vmatprep.subr.mxu0 0.0
        %982 = vmatpush1.msra.mxu0 0.0
        %983 = vmatprep.subr.mxu0 0.0
        %984 = vmatpush1.msra.mxu0 0.0
        %985 = vmatprep.subr.mxu0 0.0
        %986 = vmatpush1.msra.mxu0 0.0
        %987 = vmatprep.subr.mxu0 0.0
        %988 = vmatpush1.msra.mxu0 0.0
        %989 = vmatprep.subr.mxu0 0.0
        %990 = vmatpush1.msra.mxu0 0.0
        %991 = vmatprep.subr.mxu0 0.0
        %992 = vmatpush1.msra.mxu0 0.0
        %993 = vmatprep.subr.mxu0 0.0
        %994 = vmatpush1.msra.mxu0 0.0
        %995 = vmatprep.subr.mxu0 0.0
        %996 = vmatpush1.msra.mxu0 0.0
        %997 = vmatprep.subr.mxu0 0.0
        %998 = vmatpush1.msra.mxu0 0.0
        %999 = vmatprep.subr.mxu0 0.0
        %1000 = vmatpush1.msra.mxu0 0.0
        %1001 = vmatprep.subr.mxu0 0.0
        %1002 = vmatpush1.msra.mxu0 0.0
        %1003 = vmatprep.subr.mxu0 0.0
        %1004 = vmatpush1.msra.mxu0 0.0
        %1005 = vmatprep.subr.mxu0 0.0
        %1006 = vmatpush1.msra.mxu0 0.0
        %1007 = vmatprep.subr.mxu0 0.0
        %1008 = vmatpush1.msra.mxu0 0.0
        %1009 = vmatprep.subr.mxu0 0.0
        %1010 = vmatpush1.msra.mxu0 0.0
        %1011 = vmatprep.subr.mxu0 0.0
        %1012 = vmatpush1.msra.mxu0 0.0
        %1013 = vmatprep.subr.mxu0 0.0
        %1014 = vmatpush1.msra.mxu0 0.0
        %1015 = vmatprep.subr.mxu0 0.0
        %1016 = vmatpush1.msra.mxu0 0.0
        %1017 = vmatprep.subr.mxu0 0.0
        %1018 = vmatpush1.msra.mxu0 0.0
        %1019 = vmatprep.subr.mxu0 0.0
        %1020 = vmatpush1.msra.mxu0 0.0
        %1021 = vmatprep.subr.mxu0 0.0
        %1022 = vmatpush1.msra.mxu0 0.0
        %1023 = vmatprep.subr.mxu0 0.0
        %1024 = vmatpush1.msra.mxu0 0.0
        %1025 = vmatprep.mubr.f32.mxu0 0.0
        %1026 = vmatmul.mubr.f32.gmra.mrb[0].mxu0 %v861
        %v1027 = vpop.f32.mrb[0].mxu0
        %v1028 = vadd.f32 %v843, %v1027
        %v1029 = vpop.f32.mrb[0].mxu0
        %v1030 = vadd.f32 %v843, %v1029
        %1031 = vmatprep.mubr.f32.mxu0 0.0
        %1032 = vmatmul.mubr.f32.gmra.mrb[0].mxu0 %v864
        %v1033 = vpop.f32.mrb[0].mxu0
        %v1034 = vadd.f32 %v848, %v1033
        %v1035 = vpop.f32.mrb[0].mxu0
        %v1036 = vadd.f32 %v848, %v1035
        %1037 = vmatprep.mubr.f32.mxu0 0.0
        %1038 = vmatmul.mubr.f32.gmra.mrb[0].mxu0 %v867
        %v1039 = vpop.f32.mrb[0].mxu0
        %v1040 = vadd.f32 %v853, %v1039
        %v1041 = vpop.f32.mrb[0].mxu0
        %v1042 = vadd.f32 %v853, %v1041
        %1043 = vmatprep.mubr.f32.mxu0 0.0
        %1044 = vmatmul.mubr.f32.gmra.mrb[0].mxu0 %v870
        %v1045 = vpop.f32.mrb[0].mxu0
        %v1046 = vadd.f32 %v858, %v1045
        %v1047 = vpop.f32.mrb[0].mxu0
        %v1048 = vadd.f32 %v858, %v1047
        %1049 = vdwg.mxu0
        %v1050 = vmax.f32 %v939, 0.0
        %v1051 = vmax.f32 %v941, 0.0
        %v1052 = vmax.f32 %v1028, 0.0
        %v1053 = vmax.f32 %v1030, 0.0
        %v1054 = vmax.f32 %v945, 0.0
        %v1055 = vmax.f32 %v947, 0.0
        %v1056 = vmax.f32 %v1034, 0.0
        %v1057 = vmax.f32 %v1036, 0.0
        %v1058 = vmax.f32 %v951, 0.0
        %v1059 = vmax.f32 %v953, 0.0
        %v1060 = vmax.f32 %v1040, 0.0
        %v1061 = vmax.f32 %v1042, 0.0
        %v1062 = vmax.f32 %v957, 0.0
        %v1063 = vmax.f32 %v959, 0.0
        %v1064 = vmax.f32 %v1046, 0.0
        %v1065 = vmax.f32 %v1048, 0.0
        %v1066 = vld [vmem:[%s7] sm:$0x3]
        %v1067 = vld [vmem:[%s8] sm:$0x3]
        %1069 = vset.pattern.permute.xlu0 0
        %1070 = vperm.xlu0 %1069, %v1067
        %v1071 = vpop.permute.xlu0 %1070
        %v1074 = vsel %vm625, %v1066, 0
        %1076 = vmatprep.subr.mxu0 %v1051
        %1077 = vmatpush1.msra.mxu0 %v1050
        %1078 = vmatprep.subr.mxu0 %v1055
        %1079 = vmatpush1.msra.mxu0 %v1054
        %1080 = vmatprep.subr.mxu0 %v1059
        %1081 = vmatpush1.msra.mxu0 %v1058
        %1082 = vmatprep.subr.mxu0 %v1063
        %1083 = vmatpush1.msra.mxu0 %v1062
        %1084 = vmatprep.subr.mxu0 0.0
        %1085 = vmatpush1.msra.mxu0 0.0
        %1086 = vmatprep.subr.mxu0 0.0
        %1087 = vmatpush1.msra.mxu0 0.0
        %1088 = vmatprep.subr.mxu0 0.0
        %1089 = vmatpush1.msra.mxu0 0.0
        %1090 = vmatprep.subr.mxu0 0.0
        %1091 = vmatpush1.msra.mxu0 0.0
        %1092 = vmatprep.subr.mxu0 0.0
        %1093 = vmatpush1.msra.mxu0 0.0
        %1094 = vmatprep.subr.mxu0 0.0
        %1095 = vmatpush1.msra.mxu0 0.0
        %1096 = vmatprep.subr.mxu0 0.0
        %1097 = vmatpush1.msra.mxu0 0.0
        %1098 = vmatprep.subr.mxu0 0.0
        %1099 = vmatpush1.msra.mxu0 0.0
        %1100 = vmatprep.subr.mxu0 0.0
        %1101 = vmatpush1.msra.mxu0 0.0
        %1102 = vmatprep.subr.mxu0 0.0
        %1103 = vmatpush1.msra.mxu0 0.0
        %1104 = vmatprep.subr.mxu0 0.0
        %1105 = vmatpush1.msra.mxu0 0.0
        %1106 = vmatprep.subr.mxu0 0.0
        %1107 = vmatpush1.msra.mxu0 0.0
        %1108 = vmatprep.subr.mxu0 0.0
        %1109 = vmatpush1.msra.mxu0 0.0
        %1110 = vmatprep.subr.mxu0 0.0
        %1111 = vmatpush1.msra.mxu0 0.0
        %1112 = vmatprep.subr.mxu0 0.0
        %1113 = vmatpush1.msra.mxu0 0.0
        %1114 = vmatprep.subr.mxu0 0.0
        %1115 = vmatpush1.msra.mxu0 0.0
        %1116 = vmatprep.subr.mxu0 0.0
        %1117 = vmatpush1.msra.mxu0 0.0
        %1118 = vmatprep.subr.mxu0 0.0
        %1119 = vmatpush1.msra.mxu0 0.0
        %1120 = vmatprep.subr.mxu0 0.0
        %1121 = vmatpush1.msra.mxu0 0.0
        %1122 = vmatprep.subr.mxu0 0.0
        %1123 = vmatpush1.msra.mxu0 0.0
        %1124 = vmatprep.subr.mxu0 0.0
        %1125 = vmatpush1.msra.mxu0 0.0
        %1126 = vmatprep.subr.mxu0 0.0
        %1127 = vmatpush1.msra.mxu0 0.0
        %1128 = vmatprep.subr.mxu0 0.0
        %1129 = vmatpush1.msra.mxu0 0.0
        %1130 = vmatprep.subr.mxu0 0.0
        %1131 = vmatpush1.msra.mxu0 0.0
        %1132 = vmatprep.subr.mxu0 0.0
        %1133 = vmatpush1.msra.mxu0 0.0
        %1134 = vmatprep.subr.mxu0 0.0
        %1135 = vmatpush1.msra.mxu0 0.0
        %1136 = vmatprep.subr.mxu0 0.0
        %1137 = vmatpush1.msra.mxu0 0.0
        %1138 = vmatprep.subr.mxu0 0.0
        %1139 = vmatpush1.msra.mxu0 0.0
        %1140 = vmatprep.mubr.f32.mxu0 0.0
        %1141 = vmatmul.mubr.f32.gmra.mrb[0].mxu0 %v1074
        %v1142 = vpop.f32.mrb[0].mxu0
        %v1143 = vadd.f32 %v1071, %v1142
        %v1144 = vpop.f32.mrb[0].mxu0
        %v1145 = vadd.f32 %v1071, %v1144
        %1146 = vdwg.mxu0
        %1147 = vmatprep.subr.mxu0 %v1053
        %1148 = vmatpush1.msra.mxu0 %v1052
        %1149 = vmatprep.subr.mxu0 %v1057
        %1150 = vmatpush1.msra.mxu0 %v1056
        %1151 = vmatprep.subr.mxu0 %v1061
        %1152 = vmatpush1.msra.mxu0 %v1060
        %1153 = vmatprep.subr.mxu0 %v1065
        %1154 = vmatpush1.msra.mxu0 %v1064
        %1155 = vmatprep.subr.mxu0 0.0
        %1156 = vmatpush1.msra.mxu0 0.0
        %1157 = vmatprep.subr.mxu0 0.0
        %1158 = vmatpush1.msra.mxu0 0.0
        %1159 = vmatprep.subr.mxu0 0.0
        %1160 = vmatpush1.msra.mxu0 0.0
        %1161 = vmatprep.subr.mxu0 0.0
        %1162 = vmatpush1.msra.mxu0 0.0
        %1163 = vmatprep.subr.mxu0 0.0
        %1164 = vmatpush1.msra.mxu0 0.0
        %1165 = vmatprep.subr.mxu0 0.0
        %1166 = vmatpush1.msra.mxu0 0.0
        %1167 = vmatprep.subr.mxu0 0.0
        %1168 = vmatpush1.msra.mxu0 0.0
        %1169 = vmatprep.subr.mxu0 0.0
        %1170 = vmatpush1.msra.mxu0 0.0
        %1171 = vmatprep.subr.mxu0 0.0
        %1172 = vmatpush1.msra.mxu0 0.0
        %1173 = vmatprep.subr.mxu0 0.0
        %1174 = vmatpush1.msra.mxu0 0.0
        %1175 = vmatprep.subr.mxu0 0.0
        %1176 = vmatpush1.msra.mxu0 0.0
        %1177 = vmatprep.subr.mxu0 0.0
        %1178 = vmatpush1.msra.mxu0 0.0
        %1179 = vmatprep.subr.mxu0 0.0
        %1180 = vmatpush1.msra.mxu0 0.0
        %1181 = vmatprep.subr.mxu0 0.0
        %1182 = vmatpush1.msra.mxu0 0.0
        %1183 = vmatprep.subr.mxu0 0.0
        %1184 = vmatpush1.msra.mxu0 0.0
        %1185 = vmatprep.subr.mxu0 0.0
        %1186 = vmatpush1.msra.mxu0 0.0
        %1187 = vmatprep.subr.mxu0 0.0
        %1188 = vmatpush1.msra.mxu0 0.0
        %1189 = vmatprep.subr.mxu0 0.0
        %1190 = vmatpush1.msra.mxu0 0.0
        %1191 = vmatprep.subr.mxu0 0.0
        %1192 = vmatpush1.msra.mxu0 0.0
        %1193 = vmatprep.subr.mxu0 0.0
        %1194 = vmatpush1.msra.mxu0 0.0
        %1195 = vmatprep.subr.mxu0 0.0
        %1196 = vmatpush1.msra.mxu0 0.0
        %1197 = vmatprep.subr.mxu0 0.0
        %1198 = vmatpush1.msra.mxu0 0.0
        %1199 = vmatprep.subr.mxu0 0.0
        %1200 = vmatpush1.msra.mxu0 0.0
        %1201 = vmatprep.subr.mxu0 0.0
        %1202 = vmatpush1.msra.mxu0 0.0
        %1203 = vmatprep.subr.mxu0 0.0
        %1204 = vmatpush1.msra.mxu0 0.0
        %1205 = vmatprep.subr.mxu0 0.0
        %1206 = vmatpush1.msra.mxu0 0.0
        %1207 = vmatprep.subr.mxu0 0.0
        %1208 = vmatpush1.msra.mxu0 0.0
        %1209 = vmatprep.subr.mxu0 0.0
        %1210 = vmatpush1.msra.mxu0 0.0
        %1211 = vmatprep.mubr.f32.mxu0 0.0
        %1212 = vmatmul.mubr.f32.gmra.mrb[0].mxu0 %v1074
        %v1213 = vpop.f32.mrb[0].mxu0
        %v1214 = vadd.f32 %v1071, %v1213
        %v1215 = vpop.f32.mrb[0].mxu0
        %v1216 = vadd.f32 %v1071, %v1215
        %1217 = vdwg.mxu0
        %v1222 = vcombine.low %v1143, %v1145
        %v1223 = vcombine.low %v1214, %v1216
        %v1225 = vunpack.c.l.s4 1983009808
        %v1226 = vunpack.c.0.s8 %v1225
        %v1227 = vlaneseq
        %v1228 = vshrl.u32 %v1227, 7
        %v1229 = vsub.s32 %v1226, %v1228
        %v1230 = vrot.slane %v1222, %v1229
        %v1232 = vunpack.c.l.s4 1983009808
        %v1233 = vunpack.c.0.s8 %v1232
        %v1234 = vlaneseq
        %v1235 = vshrl.u32 %v1234, 7
        %v1236 = vsub.s32 %v1233, %v1235
        %v1237 = vrot.slane %v1223, %v1236
        %v1238 = vcombine.low %v1230, %v1237
        %1240 = vst [vmem:[%s326] sm:$0xff] %v1238
        %s1241 = sand.u32 %s225, 1
        %s1242 = scalar_lea.sflag [#allocation3], %s1241
        %s1243 = sand.u32 %s225, 1
        %s1244 = smul.addr %s1243, 8
        %s1245 = scalar_lea.vmem [#allocation2], %s1244
        // Predicated region
        $region57: #{generator3_forward.1} parent=55 // pred_check
          %p1246 = pneg %p235
        $region58: #{generator3_forward.1} parent=55 // pred_check_branch
          %1248 = sbr.rel (%p1246) target = $region60
        $region59: #{generator3_forward.1} parent=55 // pred_region
          %s1249 = smul.u32 4, %s23
          %s1251 = ssub.s32 128, 128
          %1252 = vsyncadd %s1242, %s1251
          %s1253 = smul.addr %s1249, 32
          %s1254 = scalar_lea.hbm %s9, %s1253
          %s1256 = sshll.u32 %s1245, 4
          %s1257 = int_to_ptr.vmem [resolvable:$true] %s1256
          %1259 = dma.vmem_to_hbm [thread:$0]  %s1257, 128, %s1254, %s1242
        $region60: #{generator3_forward.1} parent=55 // pred_fallthru
          _
      $region56: #{generator3_forward.1} parent=5 // pred_fallthru
        _
      %p1260 = scmp.le.s32.totalorder 2, %s18
      // Predicated region
      $region61: #{generator3_forward.1} parent=5 // pred_check
        %p1261 = pneg %p1260
      $region62: #{generator3_forward.1} parent=5 // pred_check_branch
        %1263 = sbr.rel (%p1261) target = $region64
      $region63: #{generator3_forward.1} parent=5 // pred_region
        %s1264 = ssub.s32 %s18, 2
        // Predicated region
        $region65: #{generator3_forward.1} parent=63 // pred_check
          %p1265 = pneg %p241
        $region66: #{generator3_forward.1} parent=63 // pred_check_branch
          %1267 = sbr.rel (%p1265) target = $region68
        $region67: #{generator3_forward.1} parent=63 // pred_region
          %s1268 = sand.u32 %s226, 1
          %s1269 = scalar_lea.sflag [#allocation3], %s1268
          %s1270 = sand.u32 %s226, 1
          %s1271 = smul.addr %s1270, 8
          %s1272 = scalar_lea.vmem [#allocation2], %s1271
          %1273 = dma.done %s1269, 128
        $region68: #{generator3_forward.1} parent=63 // pred_fallthru
          _
      $region64: #{generator3_forward.1} parent=5 // pred_fallthru
        _
    $region6: #{generator3_forward.1} parent=1 // loop_footer
      %s22 = sadd.s32 1, %s18
    $region7: #{generator3_forward.1} parent=1 // loop_footer_branch
      %17 = sbr.rel target = $region3
    $region8: #{generator3_forward.1} parent=1 // loop_exit
      _
    %1274 = vsyncpa [#allocation3], 1
    %s1275 = scalar_lea.sflag [#allocation3], 1
    %1276 = vsyncpa %s1275, 1

</llo_original>
